<compile_context>
chip_gen: v7x
topology: tpu7x:2x2x1
jax: 0.10.0
libtpu: 0.0.40
codegen_flags: <defaults>
</compile_context>

<pallas_src>
import math
from functools import partial

import jax
import jax.numpy as jnp
from jax import lax
from jax.experimental import pallas as pl
from jax.experimental.pallas import tpu as pltpu

_INV_SQRT2 = 1.0 / math.sqrt(2.0)
_MIB = 1024 * 1024


def _mlp_kernel(x_ref, g_ref, bta_ref, w1_ref, b1_ref, w2_ref, b2_ref, o_ref,
                xn_ref, acc_ref, *, approx_gelu: bool):
    k = pl.program_id(1)

    # ---- row-tile prologue (first mlp_dim chunk): LayerNorm once, zero acc ----
    @pl.when(k == 0)
    def _():
        x = x_ref[...].astype(jnp.float32)                    # (bm, D)
        # One-pass stats: two independent cross-lane reductions overlap in XLU.
        s1 = jnp.sum(x, axis=-1, keepdims=True)
        s2 = jnp.sum(x * x, axis=-1, keepdims=True)
        inv_d = 1.0 / x.shape[-1]
        mean = s1 * inv_d
        var = s2 * inv_d - mean * mean
        xn = (x - mean) * lax.rsqrt(var + 1e-5)               # eps = torch default
        xn = xn * g_ref[...] + bta_ref[...]                    # LN affine in f32
        xn_ref[...] = xn.astype(xn_ref.dtype)                  # bf16 for the MXU
        acc_ref[...] = jnp.zeros_like(acc_ref)

    # ---- per mlp_dim chunk: Linear1 chunk -> GELU -> Linear2 chunk-accumulate ----
    h = jnp.dot(xn_ref[...], w1_ref[...],
                preferred_element_type=jnp.float32) + b1_ref[...]   # (bm, tk) f32
    if approx_gelu:
        h = jax.nn.gelu(h, approximate=True)        # tanh -> EUP slot (v6e/v7x fast path)
    else:
        h = 0.5 * h * (1.0 + lax.erf(h * _INV_SQRT2))   # exact, matches torch.nn.GELU
    # Dropout(p=0.0): identity.
    acc_ref[...] += jnp.dot(h.astype(jnp.bfloat16), w2_ref[...],
                            preferred_element_type=jnp.float32)

    # ---- epilogue (last chunk): add bias2, store (Dropout p=0 identity) ----
    @pl.when(k == pl.num_programs(1) - 1)
    def _():
        o_ref[...] = (acc_ref[...] + b2_ref[...]).astype(o_ref.dtype)


def _round_up(n: int, m: int) -> int:
    return ((n + m - 1) // m) * m


def _choose_tk(mlp_dim: int, target: int) -> int:
    """Largest multiple of 128 that divides mlp_dim and is <= target."""
    if mlp_dim <= target or mlp_dim % 128 != 0:
        return mlp_dim
    best = 128
    t = 256
    while t <= target:
        if mlp_dim % t == 0:
            best = t
        t += 128
    return best


def prepare_weights(w1, w2):
    """Cast MXU weights to bf16 ONCE. Call OUTSIDE the jitted forward so the
    cast is not a per-call extra HBM pass over the full f32 weights."""
    return w1.astype(jnp.bfloat16), w2.astype(jnp.bfloat16)


@partial(jax.jit, static_argnames=("block_rows", "block_k", "approx_gelu"))
def mlp_forward(x, gamma, beta, w1, b1, w2, b2, *,
                block_rows: int = None, block_k: int = None,
                approx_gelu: bool = False):
    """x: (B, S, D).  w1: (D, mlp_dim), w2: (mlp_dim, out_dim) (pre-transposed,
    ideally bf16 via prepare_weights).  Returns (B, S, out_dim) in x.dtype."""
    B, S, D = x.shape
    mlp_dim = w1.shape[1]
    out_dim = w2.shape[1]
    N = B * S

    # Generation-aware VMEM capacity (v5e/v6e: 128 MiB, v7x: 64 MiB per TC).
    try:
        vmem_cap = int(pltpu.get_tpu_info().vmem_capacity_bytes)
    except Exception:
        vmem_cap = 64 * _MIB  # conservative fallback

    # Row tile: 512 on 128 MiB parts, 256 on 64 MiB parts; multiple of 8 sublanes.
    if block_rows is None:
        block_rows = 512 if vmem_cap >= 100 * _MIB else 256
    bm = min(block_rows, _round_up(N, 8))
    # Guarantee >= 2 steps on the "parallel" row axis so both v7x TCs get work.
    if _round_up(N, bm) // bm < 2 and bm > 8:
        bm = max(8, _round_up(-(-N // 2), 8))
    n_pad = _round_up(N, bm)

    # mlp_dim (K of the 2nd matmul) chunk: multiple of 128 dividing mlp_dim.
    if block_k is None:
        tk = _choose_tk(mlp_dim, 1024)
    else:
        tk = min(block_k, mlp_dim)
        if mlp_dim % tk != 0 or (tk != mlp_dim and tk % 128 != 0):
            tk = _choose_tk(mlp_dim, tk)
    nk = mlp_dim // tk

    x2d = x.reshape(N, D)
    if n_pad != N:
        x2d = jnp.pad(x2d, ((0, n_pad - N), (0, 0)))

    g2d = gamma.reshape(1, D).astype(jnp.float32)
    bt2d = beta.reshape(1, D).astype(jnp.float32)
    b1_2d = b1.reshape(1, mlp_dim).astype(jnp.float32)
    b2_2d = b2.reshape(1, out_dim).astype(jnp.float32)

    io_bytes = x.dtype.itemsize
    w_bytes = w1.dtype.itemsize
    vmem_est = (
        2 * bm * D * io_bytes                     # x tile (double-buffered)
        + 2 * bm * out_dim * io_bytes             # out tile (double-buffered)
        + 2 * (D * tk + tk * out_dim) * w_bytes   # W1/W2 chunks (double-buffered)
        + 2 * (2 * D + tk + out_dim) * 4          # gamma/beta/b1-chunk/b2
        + bm * D * 2                              # xn scratch (bf16)
        + bm * out_dim * 4                        # f32 accumulator scratch
        + bm * tk * 4                             # h intermediate
    )
    hard_cap = min(int(0.8 * vmem_cap), 100 * _MIB)
    vmem_limit = int(min(hard_cap, max(32 * _MIB, 2 * vmem_est)))

    # Grid-invariant operands: single-buffered (no wasted second VMEM buffer).
    invariant = dict(pipeline_mode=pl.Buffered(1))

    out = pl.pallas_call(
        partial(_mlp_kernel, approx_gelu=approx_gelu),
        out_shape=jax.ShapeDtypeStruct((n_pad, out_dim), x.dtype),
        grid_spec=pltpu.PrefetchScalarGridSpec(
            num_scalar_prefetch=0,
            grid=(n_pad // bm, nk),                                       # rows, mlp chunks
            in_specs=[
                pl.BlockSpec((bm, D), lambda i, k: (i, 0)),               # x rows
                pl.BlockSpec((1, D), lambda i, k: (0, 0), **invariant),   # LN gamma
                pl.BlockSpec((1, D), lambda i, k: (0, 0), **invariant),   # LN beta
                pl.BlockSpec((D, tk), lambda i, k: (0, k)),               # W1 chunk (bf16)
                pl.BlockSpec((1, tk), lambda i, k: (0, k)),               # b1 chunk
                pl.BlockSpec((tk, out_dim), lambda i, k: (k, 0)),         # W2 chunk (bf16)
                pl.BlockSpec((1, out_dim), lambda i, k: (0, 0), **invariant),  # b2
            ],
            out_specs=pl.BlockSpec((bm, out_dim), lambda i, k: (i, 0)),
            scratch_shapes=[
                pltpu.VMEM((bm, D), jnp.bfloat16),      # LayerNorm(x) reused across chunks
                pltpu.VMEM((bm, out_dim), jnp.float32),  # second-matmul accumulator
            ],
        ),
        compiler_params=pltpu.CompilerParams(
            dimension_semantics=("parallel", "arbitrary"),
            vmem_limit_bytes=vmem_limit,
        ),
    )(x2d, g2d, bt2d, w1, b1_2d, w2, b2_2d)

    return out[:N].reshape(B, S, out_dim)


def init_mlp_params(key, dim, mlp_dim, out_dim=None):
    """Synthetic init mirroring the PyTorch module's shapes.

    nn.Linear stores weight as (out, in); we materialize W^T, i.e. (in, out),
    so y = x @ Wt + b is mathematically identical."""
    out_dim = out_dim or dim
    k1, k2, k3, k4 = jax.random.split(key, 4)

    gamma = jnp.ones((dim,), jnp.float32)   # LayerNorm default init
    beta = jnp.zeros((dim,), jnp.float32)

    lim1 = 1.0 / math.sqrt(dim)
    w1 = jax.random.uniform(k1, (dim, mlp_dim), jnp.float32, -lim1, lim1)
    b1 = jax.random.uniform(k2, (mlp_dim,), jnp.float32, -lim1, lim1)

    lim2 = 1.0 / math.sqrt(mlp_dim)
    w2 = jax.random.uniform(k3, (mlp_dim, out_dim), jnp.float32, -lim2, lim2)
    b2 = jax.random.uniform(k4, (out_dim,), jnp.float32, -lim2, lim2)

    return gamma, beta, w1, b1, w2, b2


def _reference(x, gamma, beta, w1, b1, w2, b2):
    """Pure-JAX f32 reference of the same forward pass."""
    mean = jnp.mean(x, axis=-1, keepdims=True)
    var = jnp.mean((x - mean) ** 2, axis=-1, keepdims=True)
    xn = (x - mean) / jnp.sqrt(var + 1e-5) * gamma + beta
    h = xn @ w1 + b1
    h = 0.5 * h * (1.0 + lax.erf(h / math.sqrt(2.0)))
    return h @ w2 + b2


if __name__ == "__main__":
    # Small but lane-dense demo shapes (feature dims multiples of 128).
    B, S, dim, mlp_dim, out_dim = 2, 8, 128, 256, 128

    key = jax.random.PRNGKey(0)
    kx, kp = jax.random.split(key)
    x = jax.random.normal(kx, (B, S, dim), jnp.float32)
    gamma, beta, w1, b1, w2, b2 = init_mlp_params(kp, dim, mlp_dim, out_dim)

    # bf16 weight cast done ONCE, outside the jitted forward.
    w1b, w2b = prepare_weights(w1, w2)

    # block_k=128 exercises the chunked-accumulator (mlp_dim grid axis) path
    # even at these tiny demo dims; the row axis also splits into 2 steps.
    y = mlp_forward(x, gamma, beta, w1b, b1, w2b, b2, block_k=128)
    y = jax.block_until_ready(y)

    y_ref = _reference(x, gamma, beta, w1, b1, w2, b2)
    assert y.shape == (B, S, out_dim)
    # bf16 matmul inputs with f32 accumulation -> loose tolerance vs f32 ref.
    assert jnp.allclose(y, y_ref, atol=5e-2, rtol=5e-2), "mismatch vs reference"

    print("KERNEL_OK")
</pallas_src>

<mosaic_0001>
module attributes {stable_mosaic.version = 11 : i64} {
  func.func @_mlp_kernel(%arg0: i32, %arg1: i32, %arg2: memref<8x128xf32, #tpu.memory_space<vmem>>, %arg3: memref<1x128xf32, #tpu.memory_space<vmem>>, %arg4: memref<1x128xf32, #tpu.memory_space<vmem>>, %arg5: memref<128x128xbf16, #tpu.memory_space<vmem>>, %arg6: memref<1x128xf32, #tpu.memory_space<vmem>>, %arg7: memref<128x128xbf16, #tpu.memory_space<vmem>>, %arg8: memref<1x128xf32, #tpu.memory_space<vmem>>, %arg9: memref<8x128xf32, #tpu.memory_space<vmem>>, %arg10: memref<8x128xbf16, #tpu.memory_space<vmem>>, %arg11: memref<8x128xf32, #tpu.memory_space<vmem>>) attributes {dimension_semantics = [#tpu.dimension_semantics<parallel>, #tpu.dimension_semantics<arbitrary>], iteration_bounds = array<i64: 2, 2>, scalar_prefetch = 0 : i64, scratch_operands = 2 : i64, tpu.core_type = #tpu.core_type<tc>, window_params = [{transform_indices = @transform_0, window_bounds = array<i64: 8, 128>}, {pipeline_mode = #tpu.pipeline_mode<synchronous>, transform_indices = @transform_1, window_bounds = array<i64: 1, 128>}, {pipeline_mode = #tpu.pipeline_mode<synchronous>, transform_indices = @transform_2, window_bounds = array<i64: 1, 128>}, {transform_indices = @transform_3, window_bounds = array<i64: 128, 128>}, {transform_indices = @transform_4, window_bounds = array<i64: 1, 128>}, {transform_indices = @transform_5, window_bounds = array<i64: 128, 128>}, {pipeline_mode = #tpu.pipeline_mode<synchronous>, transform_indices = @transform_6, window_bounds = array<i64: 1, 128>}, {transform_indices = @transform_7, window_bounds = array<i64: 8, 128>}]} {
    %c0_i32 = arith.constant 0 : i32
    %0 = arith.cmpi eq, %arg1, %c0_i32 : i32
    %1 = arith.extui %0 : i1 to i32
    %c0_i32_0 = arith.constant 0 : i32
    %2 = arith.cmpi ne, %1, %c0_i32_0 : i32
    scf.if %2 {
      %c0_17 = arith.constant 0 : index
      %c0_18 = arith.constant 0 : index
      %26 = vector.load %arg2[%c0_17, %c0_18] : memref<8x128xf32, #tpu.memory_space<vmem>>, vector<8x128xf32>
      %cst_19 = arith.constant dense<0.000000e+00> : vector<8xf32>
      %27 = vector.multi_reduction <add>, %26, %cst_19 [1] : vector<8x128xf32> to vector<8xf32>
      %28 = vector.shape_cast %27 : vector<8xf32> to vector<8x1xf32>
      %29 = arith.mulf %26, %26 : vector<8x128xf32>
      %cst_20 = arith.constant dense<0.000000e+00> : vector<8xf32>
      %30 = vector.multi_reduction <add>, %29, %cst_20 [1] : vector<8x128xf32> to vector<8xf32>
      %31 = vector.shape_cast %30 : vector<8xf32> to vector<8x1xf32>
      %cst_21 = arith.constant 7.812500e-03 : f32
      %32 = vector.broadcast %cst_21 : f32 to vector<8x1xf32>
      %33 = arith.mulf %28, %32 : vector<8x1xf32>
      %cst_22 = arith.constant 7.812500e-03 : f32
      %34 = vector.broadcast %cst_22 : f32 to vector<8x1xf32>
      %35 = arith.mulf %31, %34 : vector<8x1xf32>
      %36 = arith.mulf %33, %33 : vector<8x1xf32>
      %37 = arith.subf %35, %36 : vector<8x1xf32>
      %38 = vector.broadcast %33 : vector<8x1xf32> to vector<8x128xf32>
      %39 = arith.subf %26, %38 : vector<8x128xf32>
      %cst_23 = arith.constant 9.99999974E-6 : f32
      %40 = vector.broadcast %cst_23 : f32 to vector<8x1xf32>
      %41 = arith.addf %37, %40 : vector<8x1xf32>
      %42 = math.rsqrt %41 : vector<8x1xf32>
      %43 = vector.broadcast %42 : vector<8x1xf32> to vector<8x128xf32>
      %44 = arith.mulf %39, %43 : vector<8x128xf32>
      %c0_24 = arith.constant 0 : index
      %c0_25 = arith.constant 0 : index
      %45 = vector.load %arg3[%c0_24, %c0_25] : memref<1x128xf32, #tpu.memory_space<vmem>>, vector<1x128xf32>
      %46 = vector.broadcast %45 : vector<1x128xf32> to vector<8x128xf32>
      %47 = arith.mulf %44, %46 : vector<8x128xf32>
      %c0_26 = arith.constant 0 : index
      %c0_27 = arith.constant 0 : index
      %48 = vector.load %arg4[%c0_26, %c0_27] : memref<1x128xf32, #tpu.memory_space<vmem>>, vector<1x128xf32>
      %49 = vector.broadcast %48 : vector<1x128xf32> to vector<8x128xf32>
      %50 = arith.addf %47, %49 : vector<8x128xf32>
      %51 = arith.truncf %50 : vector<8x128xf32> to vector<8x128xbf16>
      %c0_28 = arith.constant 0 : index
      %c0_29 = arith.constant 0 : index
      %52 = vector.load %arg10[%c0_28, %c0_29] : memref<8x128xbf16, #tpu.memory_space<vmem>>, vector<8x128xbf16>
      tpu.vector_store %arg10[%c0_28, %c0_29], %51 {strides = array<i32>} : memref<8x128xbf16, #tpu.memory_space<vmem>>, vector<8x128xbf16>,
      %cst_30 = arith.constant 0.000000e+00 : f32
      %53 = vector.broadcast %cst_30 : f32 to vector<8x128xf32>
      %c0_31 = arith.constant 0 : index
      %c0_32 = arith.constant 0 : index
      %54 = vector.load %arg11[%c0_31, %c0_32] : memref<8x128xf32, #tpu.memory_space<vmem>>, vector<8x128xf32>
      tpu.vector_store %arg11[%c0_31, %c0_32], %53 {strides = array<i32>} : memref<8x128xf32, #tpu.memory_space<vmem>>, vector<8x128xf32>,
    } else {
    }
    %c0 = arith.constant 0 : index
    %c0_1 = arith.constant 0 : index
    %3 = vector.load %arg10[%c0, %c0_1] : memref<8x128xbf16, #tpu.memory_space<vmem>>, vector<8x128xbf16>
    %c0_2 = arith.constant 0 : index
    %c0_3 = arith.constant 0 : index
    %4 = vector.load %arg5[%c0_2, %c0_3] : memref<128x128xbf16, #tpu.memory_space<vmem>>, vector<128x128xbf16>
    %cst = arith.constant dense<0.000000e+00> : vector<8x128xf32>
    %5 = tpu.matmul %3, %4, %cst {dimension_numbers = #tpu.dot_dimension_numbers<[1], [0], [0], [1], [0, 0, 1, 1], [], []>} : vector<8x128xbf16>, vector<128x128xbf16>, vector<8x128xf32> -> vector<8x128xf32>
    %c0_4 = arith.constant 0 : index
    %c0_5 = arith.constant 0 : index
    %6 = vector.load %arg6[%c0_4, %c0_5] : memref<1x128xf32, #tpu.memory_space<vmem>>, vector<1x128xf32>
    %7 = vector.broadcast %6 : vector<1x128xf32> to vector<8x128xf32>
    %8 = arith.addf %5, %7 : vector<8x128xf32>
    %cst_6 = arith.constant 5.000000e-01 : f32
    %9 = vector.broadcast %cst_6 : f32 to vector<8x128xf32>
    %10 = arith.mulf %9, %8 : vector<8x128xf32>
    %cst_7 = arith.constant 0.707106769 : f32
    %11 = vector.broadcast %cst_7 : f32 to vector<8x128xf32>
    %12 = arith.mulf %8, %11 : vector<8x128xf32>
    %13 = math.erf %12 : vector<8x128xf32>
    %cst_8 = arith.constant 1.000000e+00 : f32
    %14 = vector.broadcast %cst_8 : f32 to vector<8x128xf32>
    %15 = arith.addf %14, %13 : vector<8x128xf32>
    %16 = arith.mulf %10, %15 : vector<8x128xf32>
    %c0_9 = arith.constant 0 : index
    %c0_10 = arith.constant 0 : index
    %17 = vector.load %arg11[%c0_9, %c0_10] : memref<8x128xf32, #tpu.memory_space<vmem>>, vector<8x128xf32>
    %18 = arith.truncf %16 : vector<8x128xf32> to vector<8x128xbf16>
    %c0_11 = arith.constant 0 : index
    %c0_12 = arith.constant 0 : index
    %19 = vector.load %arg7[%c0_11, %c0_12] : memref<128x128xbf16, #tpu.memory_space<vmem>>, vector<128x128xbf16>
    %cst_13 = arith.constant dense<0.000000e+00> : vector<8x128xf32>
    %20 = tpu.matmul %18, %19, %cst_13 {dimension_numbers = #tpu.dot_dimension_numbers<[1], [0], [0], [1], [0, 0, 1, 1], [], []>} : vector<8x128xbf16>, vector<128x128xbf16>, vector<8x128xf32> -> vector<8x128xf32>
    %21 = arith.addf %17, %20 : vector<8x128xf32>
    %c0_14 = arith.constant 0 : index
    %c0_15 = arith.constant 0 : index
    %22 = vector.load %arg11[%c0_14, %c0_15] : memref<8x128xf32, #tpu.memory_space<vmem>>, vector<8x128xf32>
    tpu.vector_store %arg11[%c0_14, %c0_15], %21 {strides = array<i32>} : memref<8x128xf32, #tpu.memory_space<vmem>>, vector<8x128xf32>,
    %c1_i32 = arith.constant 1 : i32
    %23 = arith.cmpi eq, %arg1, %c1_i32 : i32
    %24 = arith.extui %23 : i1 to i32
    %c0_i32_16 = arith.constant 0 : i32
    %25 = arith.cmpi ne, %24, %c0_i32_16 : i32
    scf.if %25 {
      %c0_17 = arith.constant 0 : index
      %c0_18 = arith.constant 0 : index
      %26 = vector.load %arg11[%c0_17, %c0_18] : memref<8x128xf32, #tpu.memory_space<vmem>>, vector<8x128xf32>
      %c0_19 = arith.constant 0 : index
      %c0_20 = arith.constant 0 : index
      %27 = vector.load %arg8[%c0_19, %c0_20] : memref<1x128xf32, #tpu.memory_space<vmem>>, vector<1x128xf32>
      %28 = vector.broadcast %27 : vector<1x128xf32> to vector<8x128xf32>
      %29 = arith.addf %26, %28 : vector<8x128xf32>
      %c0_21 = arith.constant 0 : index
      %c0_22 = arith.constant 0 : index
      %30 = vector.load %arg9[%c0_21, %c0_22] : memref<8x128xf32, #tpu.memory_space<vmem>>, vector<8x128xf32>
      tpu.vector_store %arg9[%c0_21, %c0_22], %29 {strides = array<i32>} : memref<8x128xf32, #tpu.memory_space<vmem>>, vector<8x128xf32>,
    } else {
    }
    return
  }
  func.func @transform_0(%arg0: i32, %arg1: i32) -> (i32, i32) {
    %c0_i32 = arith.constant 0 : i32
    %c0_i32_0 = arith.constant 0 : i32
    return %arg0, %c0_i32 : i32, i32
  }
  func.func @transform_1(%arg0: i32, %arg1: i32) -> (i32, i32) {
    %c0_i32 = arith.constant 0 : i32
    %c0_i32_0 = arith.constant 0 : i32
    %c0_i32_1 = arith.constant 0 : i32
    return %c0_i32, %c0_i32_0 : i32, i32
  }
  func.func @transform_2(%arg0: i32, %arg1: i32) -> (i32, i32) {
    %c0_i32 = arith.constant 0 : i32
    %c0_i32_0 = arith.constant 0 : i32
    %c0_i32_1 = arith.constant 0 : i32
    return %c0_i32, %c0_i32_0 : i32, i32
  }
  func.func @transform_3(%arg0: i32, %arg1: i32) -> (i32, i32) {
    %c0_i32 = arith.constant 0 : i32
    %c0_i32_0 = arith.constant 0 : i32
    return %c0_i32, %arg1 : i32, i32
  }
  func.func @transform_4(%arg0: i32, %arg1: i32) -> (i32, i32) {
    %c0_i32 = arith.constant 0 : i32
    %c0_i32_0 = arith.constant 0 : i32
    return %c0_i32, %arg1 : i32, i32
  }
  func.func @transform_5(%arg0: i32, %arg1: i32) -> (i32, i32) {
    %c0_i32 = arith.constant 0 : i32
    %c0_i32_0 = arith.constant 0 : i32
    return %arg1, %c0_i32 : i32, i32
  }
  func.func @transform_6(%arg0: i32, %arg1: i32) -> (i32, i32) {
    %c0_i32 = arith.constant 0 : i32
    %c0_i32_0 = arith.constant 0 : i32
    %c0_i32_1 = arith.constant 0 : i32
    return %c0_i32, %c0_i32_0 : i32, i32
  }
  func.func @transform_7(%arg0: i32, %arg1: i32) -> (i32, i32) {
    %c0_i32 = arith.constant 0 : i32
    %c0_i32_0 = arith.constant 0 : i32
    return %arg0, %c0_i32 : i32, i32
  }
}

</mosaic_0001>

<llo_original>
// kernel: mlp_forward.1
$region0: #{mlp_forward.1}
  #allocation0 [shape = 'u32[]', space=smem, size = 0x4, offset = 0x4, fixed_abs, tag = 'smem constant byte address 0x4 - core index']
  #allocation1 [shape = 'u32[144,128]{1,0:T(1,128)}', space=vmem, size = 0x12000, scoped, tag = 'internal scratch']
  #allocation2 [shape = 'bf16[8,128]{1,0:T(8,128)(2,1)}', space=vmem, size = 0x800, scoped, tag = 'scratch operand']
  #allocation3 [shape = 'f32[8,128]{1,0:T(8,128)}', space=vmem, size = 0x1000, scoped, tag = 'scratch operand']
  %s0 = inlined_call_operand.vmem [shape: f32[16,128], index: 0, kind: input, shape index: {}]
  %s1 = inlined_call_operand.vmem [shape: f32[1,128], index: 1, kind: input, shape index: {}]
  %s2 = inlined_call_operand.vmem [shape: f32[1,128], index: 2, kind: input, shape index: {}]
  %s3 = inlined_call_operand.hbm [shape: bf16[128,256], index: 3, kind: input, shape index: {}]
  %s4 = inlined_call_operand.vmem [shape: f32[1,256], index: 4, kind: input, shape index: {}]
  %s5 = inlined_call_operand.hbm [shape: bf16[256,128], index: 5, kind: input, shape index: {}]
  %s6 = inlined_call_operand.vmem [shape: f32[1,128], index: 6, kind: input, shape index: {}]
  %s7 = inlined_call_operand.hbm [shape: f32[16,128], index: 7, kind: output, shape index: {}]
  %s8 = sld [smem:[#allocation0]]
  $region77: #{mlp_forward.1} parent=0
    _
  %s10 = ssub.s32 1, %s8
  %s11 = scalar_select 0, %s10, %s8
  $region1: #{mlp_forward.1} parent=0
    #allocation4 [shape = 'u8[65536]{0}', space=vmem, size = 0x10000, scoped, tag = 'input window, operand 3']
    #allocation5 [shape = 's32[2]{0}', space=sflag, size = 0x8, scoped, tag = 'scoped memory for mlp_forward.1']
    #allocation6 [shape = 's32[2]{0}', space=sflag, size = 0x8, scoped, tag = 'scoped memory for mlp_forward.1']
    #allocation7 [shape = 'u8[65536]{0}', space=vmem, size = 0x10000, scoped, tag = 'input window, operand 5']
    #allocation8 [shape = 's32[2]{0}', space=sflag, size = 0x8, scoped, tag = 'scoped memory for mlp_forward.1']
    #allocation9 [shape = 'u8[8192]{0}', space=vmem, size = 0x2000, scoped, tag = 'output window, operand 0']
    %12 = vsyncpa [#allocation5], 0
    %s13 = scalar_lea.sflag [#allocation5], 1
    %14 = vsyncpa %s13, 0
    %15 = vsyncpa [#allocation8], 0
    %s16 = scalar_lea.sflag [#allocation8], 1
    %17 = vsyncpa %s16, 0
    %18 = vsyncpa [#allocation6], 0
    %s19 = scalar_lea.sflag [#allocation6], 1
    %20 = vsyncpa %s19, 0
    loop: start=0, step=1, limit=6
    $region2: #{mlp_forward.1} parent=1 // loop_pre_header
      _
    $region3: #{mlp_forward.1} parent=1 // loop_header
      %s22 = sphi 0, %s26
      %p23 = scmp.ge.s32.totalorder %s22, 6
      %s29 = sphi 0, %s41
      %s30 = sphi 0, %s37
      %s31 = sphi 0, %s29
      %s32 = sphi 0, %s30
      %s33 = sphi 0, %s31
      %s34 = sphi 0, %s32
      %s44 = sphi 0, %s46
      %s47 = sphi 0, %s44
      %s48 = sphi 0, %s47
      %s64 = sphi 0, %s48
      %s68 = sphi 0, %s68
      %s70 = sphi 0, %s68
      %s71 = sphi 0, %s70
      %s85 = sphi 0, %s71
      %s89 = sphi 0, %s89
      %s91 = sphi 0, %s89
      %s92 = sphi 0, %s91
      %s106 = sphi 0, %s92
      %s112 = sphi 0, %s114
      %s115 = sphi 0, %s112
      %s116 = sphi 0, %s115
      %s132 = sphi 0, %s116
      %s138 = sphi 0, %s140
      %s141 = sphi 0, %s138
      %s142 = sphi 0, %s141
      %s158 = sphi 0, %s142
      %s164 = sphi 0, %s166
      %s167 = sphi 0, %s164
      %s168 = sphi 0, %s167
      %s184 = sphi 0, %s168
      %s188 = sphi 0, %s188
      %s190 = sphi 0, %s188
      %s191 = sphi 0, %s190
      %s205 = sphi 0, %s191
      %s211 = sphi 0, %s213
      %s214 = sphi 0, %s211
      %s215 = sphi 0, %s214
      %s231 = sphi 0, %s215
    $region4: #{mlp_forward.1} parent=1 // loop_header_branch
      %25 = sbr.rel (%p23) target = $region8
    $region5: #{mlp_forward.1} parent=1 // loop_body
      %s27 = ssub.s32 %s22, 1
      %s28 = ssub.s32 %s22, 2
      %s35 = sadd.s32 1, %s30
      %p36 = scmp.ge.s32.totalorder %s35, 2
      %s37 = scalar_select %p36, 0, %s35
      %s38 = sadd.s32 1, %s29
      %s39 = scalar_select %p36, %s38, %s29
      %p40 = scmp.ge.s32.totalorder %s39, 2
      %s41 = scalar_select %p40, 0, %s39
      %s42 = ssub.s32 %s29, %s41
      %p43 = scmp.eq.s32.totalorder %s42, 0
      %s45 = sadd.s32 %s44, 1
      %s46 = scalar_select %p43, %s44, %s45
      %p49 = pneg %p43
      %p50 = scmp.eq.s32.totalorder %s22, 3
      %p51 = por %p49, %p50
      %p52 = scmp.ne.s32.totalorder %s44, %s47
      %p53 = scmp.eq.s32.totalorder %s22, 0
      %p54 = por %p52, %p53
      %p55 = scmp.ne.s32.totalorder %s44, %s47
      %p56 = scmp.eq.s32.totalorder %s27, 3
      %p57 = por %p55, %p56
      %p58 = scmp.ne.s32.totalorder %s47, %s48
      %p59 = scmp.eq.s32.totalorder %s27, 0
      %p60 = por %p58, %p59
      %p61 = scmp.ne.s32.totalorder %s47, %s48
      %p62 = scmp.eq.s32.totalorder %s28, 3
      %p63 = por %p61, %p62
      %p65 = scmp.ne.s32.totalorder %s48, %s64
      %p66 = scmp.eq.s32.totalorder %s28, 0
      %p67 = por %p65, %p66
      %s69 = sadd.s32 %s68, 1
      %p72 = scmp.eq.s32.totalorder %s22, 3
      %p73 = scmp.ne.s32.totalorder %s68, %s70
      %p74 = scmp.eq.s32.totalorder %s22, 0
      %p75 = por %p73, %p74
      %p76 = scmp.ne.s32.totalorder %s68, %s70
      %p77 = scmp.eq.s32.totalorder %s27, 3
      %p78 = por %p76, %p77
      %p79 = scmp.ne.s32.totalorder %s70, %s71
      %p80 = scmp.eq.s32.totalorder %s27, 0
      %p81 = por %p79, %p80
      %p82 = scmp.ne.s32.totalorder %s70, %s71
      %p83 = scmp.eq.s32.totalorder %s28, 3
      %p84 = por %p82, %p83
      %p86 = scmp.ne.s32.totalorder %s71, %s85
      %p87 = scmp.eq.s32.totalorder %s28, 0
      %p88 = por %p86, %p87
      %s90 = sadd.s32 %s89, 1
      %p93 = scmp.eq.s32.totalorder %s22, 3
      %p94 = scmp.ne.s32.totalorder %s89, %s91
      %p95 = scmp.eq.s32.totalorder %s22, 0
      %p96 = por %p94, %p95
      %p97 = scmp.ne.s32.totalorder %s89, %s91
      %p98 = scmp.eq.s32.totalorder %s27, 3
      %p99 = por %p97, %p98
      %p100 = scmp.ne.s32.totalorder %s91, %s92
      %p101 = scmp.eq.s32.totalorder %s27, 0
      %p102 = por %p100, %p101
      %p103 = scmp.ne.s32.totalorder %s91, %s92
      %p104 = scmp.eq.s32.totalorder %s28, 3
      %p105 = por %p103, %p104
      %p107 = scmp.ne.s32.totalorder %s92, %s106
      %p108 = scmp.eq.s32.totalorder %s28, 0
      %p109 = por %p107, %p108
      %s110 = ssub.s32 %s30, %s37
      %p111 = scmp.eq.s32.totalorder %s110, 0
      %s113 = sadd.s32 %s112, 1
      %s114 = scalar_select %p111, %s112, %s113
      %p117 = pneg %p111
      %p118 = scmp.eq.s32.totalorder %s22, 3
      %p119 = por %p117, %p118
      %p120 = scmp.ne.s32.totalorder %s112, %s115
      %p121 = scmp.eq.s32.totalorder %s22, 0
      %p122 = por %p120, %p121
      %p123 = scmp.ne.s32.totalorder %s112, %s115
      %p124 = scmp.eq.s32.totalorder %s27, 3
      %p125 = por %p123, %p124
      %p126 = scmp.ne.s32.totalorder %s115, %s116
      %p127 = scmp.eq.s32.totalorder %s27, 0
      %p128 = por %p126, %p127
      %p129 = scmp.ne.s32.totalorder %s115, %s116
      %p130 = scmp.eq.s32.totalorder %s28, 3
      %p131 = por %p129, %p130
      %p133 = scmp.ne.s32.totalorder %s116, %s132
      %p134 = scmp.eq.s32.totalorder %s28, 0
      %p135 = por %p133, %p134
      %s136 = ssub.s32 %s30, %s37
      %p137 = scmp.eq.s32.totalorder %s136, 0
      %s139 = sadd.s32 %s138, 1
      %s140 = scalar_select %p137, %s138, %s139
      %p143 = pneg %p137
      %p144 = scmp.eq.s32.totalorder %s22, 3
      %p145 = por %p143, %p144
      %p146 = scmp.ne.s32.totalorder %s138, %s141
      %p147 = scmp.eq.s32.totalorder %s22, 0
      %p148 = por %p146, %p147
      %p149 = scmp.ne.s32.totalorder %s138, %s141
      %p150 = scmp.eq.s32.totalorder %s27, 3
      %p151 = por %p149, %p150
      %p152 = scmp.ne.s32.totalorder %s141, %s142
      %p153 = scmp.eq.s32.totalorder %s27, 0
      %p154 = por %p152, %p153
      %p155 = scmp.ne.s32.totalorder %s141, %s142
      %p156 = scmp.eq.s32.totalorder %s28, 3
      %p157 = por %p155, %p156
      %p159 = scmp.ne.s32.totalorder %s142, %s158
      %p160 = scmp.eq.s32.totalorder %s28, 0
      %p161 = por %p159, %p160
      %s162 = ssub.s32 %s30, %s37
      %p163 = scmp.eq.s32.totalorder %s162, 0
      %s165 = sadd.s32 %s164, 1
      %s166 = scalar_select %p163, %s164, %s165
      %p169 = pneg %p163
      %p170 = scmp.eq.s32.totalorder %s22, 3
      %p171 = por %p169, %p170
      %p172 = scmp.ne.s32.totalorder %s164, %s167
      %p173 = scmp.eq.s32.totalorder %s22, 0
      %p174 = por %p172, %p173
      %p175 = scmp.ne.s32.totalorder %s164, %s167
      %p176 = scmp.eq.s32.totalorder %s27, 3
      %p177 = por %p175, %p176
      %p178 = scmp.ne.s32.totalorder %s167, %s168
      %p179 = scmp.eq.s32.totalorder %s27, 0
      %p180 = por %p178, %p179
      %p181 = scmp.ne.s32.totalorder %s167, %s168
      %p182 = scmp.eq.s32.totalorder %s28, 3
      %p183 = por %p181, %p182
      %p185 = scmp.ne.s32.totalorder %s168, %s184
      %p186 = scmp.eq.s32.totalorder %s28, 0
      %p187 = por %p185, %p186
      %s189 = sadd.s32 %s188, 1
      %p192 = scmp.eq.s32.totalorder %s22, 3
      %p193 = scmp.ne.s32.totalorder %s188, %s190
      %p194 = scmp.eq.s32.totalorder %s22, 0
      %p195 = por %p193, %p194
      %p196 = scmp.ne.s32.totalorder %s188, %s190
      %p197 = scmp.eq.s32.totalorder %s27, 3
      %p198 = por %p196, %p197
      %p199 = scmp.ne.s32.totalorder %s190, %s191
      %p200 = scmp.eq.s32.totalorder %s27, 0
      %p201 = por %p199, %p200
      %p202 = scmp.ne.s32.totalorder %s190, %s191
      %p203 = scmp.eq.s32.totalorder %s28, 3
      %p204 = por %p202, %p203
      %p206 = scmp.ne.s32.totalorder %s191, %s205
      %p207 = scmp.eq.s32.totalorder %s28, 0
      %p208 = por %p206, %p207
      %s209 = ssub.s32 %s29, %s41
      %p210 = scmp.eq.s32.totalorder %s209, 0
      %s212 = sadd.s32 %s211, 1
      %s213 = scalar_select %p210, %s211, %s212
      %p216 = pneg %p210
      %p217 = scmp.eq.s32.totalorder %s22, 3
      %p218 = por %p216, %p217
      %p219 = scmp.ne.s32.totalorder %s211, %s214
      %p220 = scmp.eq.s32.totalorder %s22, 0
      %p221 = por %p219, %p220
      %p222 = scmp.ne.s32.totalorder %s211, %s214
      %p223 = scmp.eq.s32.totalorder %s27, 3
      %p224 = por %p222, %p223
      %p225 = scmp.ne.s32.totalorder %s214, %s215
      %p226 = scmp.eq.s32.totalorder %s27, 0
      %p227 = por %p225, %p226
      %p228 = scmp.ne.s32.totalorder %s214, %s215
      %p229 = scmp.eq.s32.totalorder %s28, 3
      %p230 = por %p228, %p229
      %p232 = scmp.ne.s32.totalorder %s215, %s231
      %p233 = scmp.eq.s32.totalorder %s28, 0
      %p234 = por %p232, %p233
      %p235 = scmp.le.s32.totalorder 1, %s22
      %p236 = scmp.lt.s32.totalorder %s22, 5
      %p237 = pnand %p235, %p236
      %p238 = pneg %p237
      // Predicated region
      $region9: #{mlp_forward.1} parent=5 // pred_check
        _
      $region10: #{mlp_forward.1} parent=5 // pred_check_branch
        %240 = sbr.rel (%p237) target = $region12
      $region11: #{mlp_forward.1} parent=5 // pred_region
        %s241 = ssub.s32 %s22, 1
        // Predicated region
        $region13: #{mlp_forward.1} parent=11 // pred_check
          %p242 = pneg %p81
        $region14: #{mlp_forward.1} parent=11 // pred_check_branch
          %244 = sbr.rel (%p242) target = $region16
        $region15: #{mlp_forward.1} parent=11 // pred_region
          _
        $region16: #{mlp_forward.1} parent=11 // pred_fallthru
          _
        // Predicated region
        $region17: #{mlp_forward.1} parent=11 // pred_check
          %p245 = pneg %p102
        $region18: #{mlp_forward.1} parent=11 // pred_check_branch
          %247 = sbr.rel (%p245) target = $region20
        $region19: #{mlp_forward.1} parent=11 // pred_region
          _
        $region20: #{mlp_forward.1} parent=11 // pred_fallthru
          _
        // Predicated region
        $region21: #{mlp_forward.1} parent=11 // pred_check
          %p248 = pneg %p201
        $region22: #{mlp_forward.1} parent=11 // pred_check_branch
          %250 = sbr.rel (%p248) target = $region24
        $region23: #{mlp_forward.1} parent=11 // pred_region
          _
        $region24: #{mlp_forward.1} parent=11 // pred_fallthru
          _
      $region12: #{mlp_forward.1} parent=5 // pred_fallthru
        _
      %p251 = scmp.lt.s32.totalorder %s22, 4
      // Predicated region
      $region25: #{mlp_forward.1} parent=5 // pred_check
        %p252 = pneg %p251
      $region26: #{mlp_forward.1} parent=5 // pred_check_branch
        %254 = sbr.rel (%p252) target = $region28
      $region27: #{mlp_forward.1} parent=5 // pred_region
        // Predicated region
        $region29: #{mlp_forward.1} parent=27 // pred_check
          %p255 = pneg %p54
        $region30: #{mlp_forward.1} parent=27 // pred_check_branch
          %257 = sbr.rel (%p255) target = $region32
        $region31: #{mlp_forward.1} parent=27 // pred_region
          %p258 = scmp.lt.s32.totalorder %s29, 1
          %s259 = scalar_select %p258, %s29, 1
          %s260 = smul.addr %s259, 8
          %s261 = scalar_lea.vmem %s0, %s260
        $region32: #{mlp_forward.1} parent=27 // pred_fallthru
          _
        // Predicated region
        $region33: #{mlp_forward.1} parent=27 // pred_check
          %p262 = pneg %p122
        $region34: #{mlp_forward.1} parent=27 // pred_check_branch
          %264 = sbr.rel (%p262) target = $region36
        $region35: #{mlp_forward.1} parent=27 // pred_region
          %s265 = sand.u32 %s112, 1
          %s266 = scalar_lea.sflag [#allocation5], %s265
          %s267 = sand.u32 %s112, 1
          %s268 = smul.addr %s267, 64
          %s269 = scalar_lea.vmem [#allocation4], %s268
          %s271 = ssub.s32 1024, 1024
          %272 = vsyncadd %s266, %s271
          %s273 = smul.addr %s30, 64
          %s274 = scalar_lea.hbm %s3, %s273
          %s275 = sshll.u32 %s269, 4
          %s276 = int_to_ptr.vmem [resolvable:$true] %s275
          %281 = dma.hbm_to_vmem [thread:$0]  %s274, 1024, %s276, %s266, 128, 64, 4
        $region36: #{mlp_forward.1} parent=27 // pred_fallthru
          _
        // Predicated region
        $region37: #{mlp_forward.1} parent=27 // pred_check
          %p282 = pneg %p148
        $region38: #{mlp_forward.1} parent=27 // pred_check_branch
          %284 = sbr.rel (%p282) target = $region40
        $region39: #{mlp_forward.1} parent=27 // pred_region
          %p285 = scmp.lt.s32.totalorder %s30, 1
          %s286 = scalar_select %p285, %s30, 1
          %s287 = scalar_lea.vmem %s4, %s286
        $region40: #{mlp_forward.1} parent=27 // pred_fallthru
          _
        // Predicated region
        $region41: #{mlp_forward.1} parent=27 // pred_check
          %p288 = pneg %p174
        $region42: #{mlp_forward.1} parent=27 // pred_check_branch
          %290 = sbr.rel (%p288) target = $region44
        $region43: #{mlp_forward.1} parent=27 // pred_region
          %s291 = sand.u32 %s164, 1
          %s292 = scalar_lea.sflag [#allocation8], %s291
          %s293 = sand.u32 %s164, 1
          %s294 = smul.addr %s293, 64
          %s295 = scalar_lea.vmem [#allocation7], %s294
          %s296 = smul.u32 16, %s30
          %s298 = ssub.s32 1024, 1024
          %299 = vsyncadd %s292, %s298
          %s300 = smul.addr %s296, 64
          %s301 = scalar_lea.hbm %s5, %s300
          %s302 = sshll.u32 %s295, 4
          %s303 = int_to_ptr.vmem [resolvable:$true] %s302
          %308 = dma.hbm_to_vmem [thread:$0]  %s301, 1024, %s303, %s292, 64, 64, 4
        $region44: #{mlp_forward.1} parent=27 // pred_fallthru
          _
      $region28: #{mlp_forward.1} parent=5 // pred_fallthru
        _
      %p309 = scmp.le.s32.totalorder 1, %s22
      %p310 = scmp.lt.s32.totalorder %s22, 5
      %p311 = pnand %p309, %p310
      %p312 = pneg %p311
      // Predicated region
      $region45: #{mlp_forward.1} parent=5 // pred_check
        _
      $region46: #{mlp_forward.1} parent=5 // pred_check_branch
        %314 = sbr.rel (%p311) target = $region48
      $region47: #{mlp_forward.1} parent=5 // pred_region
        %s315 = ssub.s32 %s22, 1
        %s316 = sand.u32 %s115, 1
        %s317 = scalar_lea.sflag [#allocation5], %s316
        %s318 = sand.u32 %s115, 1
        %s319 = smul.addr %s318, 64
        %s320 = scalar_lea.vmem [#allocation4], %s319
        // Predicated region
        $region49: #{mlp_forward.1} parent=47 // pred_check
          %p321 = pneg %p128
        $region50: #{mlp_forward.1} parent=47 // pred_check_branch
          %323 = sbr.rel (%p321) target = $region52
        $region51: #{mlp_forward.1} parent=47 // pred_region
          %324 = dma.done %s317, 1024
        $region52: #{mlp_forward.1} parent=47 // pred_fallthru
          _
        %s325 = sand.u32 %s167, 1
        %s326 = scalar_lea.sflag [#allocation8], %s325
        %s327 = sand.u32 %s167, 1
        %s328 = smul.addr %s327, 64
        %s329 = scalar_lea.vmem [#allocation7], %s328
        // Predicated region
        $region53: #{mlp_forward.1} parent=47 // pred_check
          %p330 = pneg %p180
        $region54: #{mlp_forward.1} parent=47 // pred_check_branch
          %332 = sbr.rel (%p330) target = $region56
        $region55: #{mlp_forward.1} parent=47 // pred_region
          %333 = dma.done %s326, 1024
        $region56: #{mlp_forward.1} parent=47 // pred_fallthru
          _
        %p334 = scmp.lt.s32.totalorder %s31, 1
        %s335 = scalar_select %p334, %s31, 1
        %s336 = smul.addr %s335, 8
        %s337 = scalar_lea.vmem %s0, %s336
        %p338 = pneg %p60
        %p339 = pneg %p57
        %p340 = pneg %p81
        %p341 = pneg %p78
        %p342 = pneg %p102
        %p343 = pneg %p99
        %s344 = sand.u32 %s115, 1
        %s345 = scalar_lea.sflag [#allocation5], %s344
        %s346 = sand.u32 %s115, 1
        %s347 = smul.addr %s346, 64
        %s348 = scalar_lea.vmem [#allocation4], %s347
        %p349 = pneg %p128
        %p350 = pneg %p125
        %p351 = scmp.lt.s32.totalorder %s32, 1
        %s352 = scalar_select %p351, %s32, 1
        %s353 = scalar_lea.vmem %s4, %s352
        %p354 = pneg %p154
        %p355 = pneg %p151
        %s356 = sand.u32 %s167, 1
        %s357 = scalar_lea.sflag [#allocation8], %s356
        %s358 = sand.u32 %s167, 1
        %s359 = smul.addr %s358, 64
        %s360 = scalar_lea.vmem [#allocation7], %s359
        %p361 = pneg %p180
        %p362 = pneg %p177
        %p363 = pneg %p201
        %p364 = pneg %p198
        %p365 = pneg %p227
        %p366 = pneg %p224
        %s367 = sand.u32 %s214, 1
        %s368 = scalar_lea.sflag [#allocation6], %s367
        %s369 = sand.u32 %s214, 1
        %s370 = smul.addr %s369, 8
        %s371 = scalar_lea.vmem [#allocation9], %s370
        %p372 = scmp.lt.s32.totalorder %s31, 1
        %s373 = scalar_select %p372, %s31, 1
        %s374 = smul.addr %s373, 8
        %s375 = scalar_lea.vmem %s0, %s374
        %p376 = scmp.lt.s32.totalorder %s32, 1
        %s377 = scalar_select %p376, %s32, 1
        %s378 = scalar_lea.vmem %s4, %s377
        %s379 = smul.u32 16, %s32
        %p381 = scmp.eq.s32.totalorder %s32, 0
        // Predicated region
        $region57: #{mlp_forward.1} parent=47 // pred_check
          %p382 = pneg %p381
        $region58: #{mlp_forward.1} parent=47 // pred_check_branch
          %384 = sbr.rel (%p382) target = $region60
        $region59: #{mlp_forward.1} parent=47 // pred_region
          %v385 = vld [vmem:[%s375] sm:$0xff]
          %386 = vadd.xlane.f32.xlu0 %v385
          %v387 = vpop.xlane.xlu0 %386
          %v388 = vmul.f32 %v385, %v385
          %389 = vadd.xlane.f32.xlu0 %v388
          %v390 = vpop.xlane.xlu0 %389
          %v391 = vmul.f32 %v387, 0.0078125
          %v392 = vmul.f32 %v390, 0.0078125
          %v393 = vmul.f32 %v391, %v391
          %v394 = vsub.f32 %v392, %v393
          %v395 = vsub.f32 %v385, %v391
          %v396 = vadd.f32 %v394, 1e-05
          %v397 = vrsqrt.pop %v396
          %v398 = vmul.f32 %v395, %v397
          %v399 = vld [vmem:[%s1] sm:$0x1]
          %v401 = vlaneseq
          %v402 = vshrl.u32 %v401, 7
          %v403 = vsub.s32 0, %v402
          %v404 = vrot.slane %v399, %v403
          %v406 = vmul.f32 %v398, %v404
          %v407 = vld [vmem:[%s2] sm:$0x1]
          %v409 = vlaneseq
          %v410 = vshrl.u32 %v409, 7
          %v411 = vsub.s32 0, %v410
          %v412 = vrot.slane %v407, %v411
          %v414 = vadd.f32 %v406, %v412
          %v415 = vpack.c.bf16 %v414, %v414
          %416 = vst [vmem:[#allocation2] sm:$0xf] %v415
          %417 = vst [vmem:[#allocation3] sm:$0xff] 0.0
        $region60: #{mlp_forward.1} parent=47 // pred_fallthru
          _
        %v418 = vld [vmem:[#allocation2] sm:$0xf]
        %v419 = vld [vmem:[%s320] sm:$0xf]
        %v420 = vld [vmem:[%s320 + $0x4] sm:$0xf]
        %v421 = vld [vmem:[%s320 + $0x8] sm:$0xf]
        %v422 = vld [vmem:[%s320 + $0xc] sm:$0xf]
        %v423 = vld [vmem:[%s320 + $0x10] sm:$0xf]
        %v424 = vld [vmem:[%s320 + $0x14] sm:$0xf]
        %v425 = vld [vmem:[%s320 + $0x18] sm:$0xf]
        %v426 = vld [vmem:[%s320 + $0x1c] sm:$0xf]
        %v427 = vld [vmem:[%s320 + $0x20] sm:$0xf]
        %v428 = vld [vmem:[%s320 + $0x24] sm:$0xf]
        %v429 = vld [vmem:[%s320 + $0x28] sm:$0xf]
        %v430 = vld [vmem:[%s320 + $0x2c] sm:$0xf]
        %v431 = vld [vmem:[%s320 + $0x30] sm:$0xf]
        %v432 = vld [vmem:[%s320 + $0x34] sm:$0xf]
        %v433 = vld [vmem:[%s320 + $0x38] sm:$0xf]
        %v434 = vld [vmem:[%s320 + $0x3c] sm:$0xf]
        %v435 = vld [vmem:[%s378] sm:$0x1]
        %v437 = vlaneseq
        %v438 = vshrl.u32 %v437, 7
        %v439 = vsub.s32 0, %v438
        %v440 = vrot.slane %v435, %v439
        %v458 = vunpack.c.l.b16 %v419
        %v459 = vunpack.c.l.b16 %v420
        %v460 = vunpack.c.l.b16 %v421
        %v461 = vunpack.c.l.b16 %v422
        %v462 = vunpack.c.l.b16 %v423
        %v463 = vunpack.c.l.b16 %v424
        %v464 = vunpack.c.l.b16 %v425
        %v465 = vunpack.c.l.b16 %v426
        %v466 = vunpack.c.l.b16 %v427
        %v467 = vunpack.c.l.b16 %v428
        %v468 = vunpack.c.l.b16 %v429
        %v469 = vunpack.c.l.b16 %v430
        %v470 = vunpack.c.l.b16 %v431
        %v471 = vunpack.c.l.b16 %v432
        %v472 = vunpack.c.l.b16 %v433
        %v473 = vunpack.c.l.b16 %v434
        %v474 = vpack.c.b16 %v459, %v458
        %v475 = vpack.c.b16 %v461, %v460
        %v476 = vpack.c.b16 %v463, %v462
        %v477 = vpack.c.b16 %v465, %v464
        %v478 = vpack.c.b16 %v467, %v466
        %v479 = vpack.c.b16 %v469, %v468
        %v480 = vpack.c.b16 %v471, %v470
        %v481 = vpack.c.b16 %v473, %v472
        %490 = vmatprep.subr.bf16.mxu0 0
        %491 = vmatpush1.bf16.msra.mxu0 %v474
        %492 = vmatprep.subr.bf16.mxu0 0
        %493 = vmatpush1.bf16.msra.mxu0 %v475
        %494 = vmatprep.subr.bf16.mxu0 0
        %495 = vmatpush1.bf16.msra.mxu0 %v476
        %496 = vmatprep.subr.bf16.mxu0 0
        %497 = vmatpush1.bf16.msra.mxu0 %v477
        %498 = vmatprep.subr.bf16.mxu0 0
        %499 = vmatpush1.bf16.msra.mxu0 %v478
        %500 = vmatprep.subr.bf16.mxu0 0
        %501 = vmatpush1.bf16.msra.mxu0 %v479
        %502 = vmatprep.subr.bf16.mxu0 0
        %503 = vmatpush1.bf16.msra.mxu0 %v480
        %504 = vmatprep.subr.bf16.mxu0 0
        %505 = vmatpush1.bf16.msra.mxu0 %v481
        %506 = vmatprep.subr.bf16.mxu0 0
        %507 = vmatpush1.bf16.msra.mxu0 0
        %508 = vmatprep.subr.bf16.mxu0 0
        %509 = vmatpush1.bf16.msra.mxu0 0
        %510 = vmatprep.subr.bf16.mxu0 0
        %511 = vmatpush1.bf16.msra.mxu0 0
        %512 = vmatprep.subr.bf16.mxu0 0
        %513 = vmatpush1.bf16.msra.mxu0 0
        %514 = vmatprep.subr.bf16.mxu0 0
        %515 = vmatpush1.bf16.msra.mxu0 0
        %516 = vmatprep.subr.bf16.mxu0 0
        %517 = vmatpush1.bf16.msra.mxu0 0
        %518 = vmatprep.subr.bf16.mxu0 0
        %519 = vmatpush1.bf16.msra.mxu0 0
        %520 = vmatprep.subr.bf16.mxu0 0
        %521 = vmatpush1.bf16.msra.mxu0 0
        %522 = vmatprep.mubr.bf16.mxu0 0
        %523 = vmatmul.mubr.bf16.gmra.mrb[0].mxu0 %v418
        %v524 = vpop.f32.mrb[0].mxu0
        %v525 = vadd.f32 %v440, %v524
        %v526 = vpop.f32.mrb[0].mxu0
        %v527 = vpop.f32.mrb[0].mxu0
        %v528 = vpop.f32.mrb[0].mxu0
        %529 = vdwg.mxu0
        %v530 = vmul.f32 %v525, 0.5
        %v531 = vmul.f32 %v525, 0.70710677
        %v532 = verf.f32.pop %v531
        %v533 = vadd.f32 %v532, 1.0
        %v534 = vmul.f32 %v530, %v533
        %v535 = vld [vmem:[#allocation3] sm:$0xff]
        %v536 = vpack.c.bf16 %v534, %v534
        %v537 = vld [vmem:[%s329] sm:$0xf]
        %v538 = vld [vmem:[%s329 + $0x4] sm:$0xf]
        %v539 = vld [vmem:[%s329 + $0x8] sm:$0xf]
        %v540 = vld [vmem:[%s329 + $0xc] sm:$0xf]
        %v541 = vld [vmem:[%s329 + $0x10] sm:$0xf]
        %v542 = vld [vmem:[%s329 + $0x14] sm:$0xf]
        %v543 = vld [vmem:[%s329 + $0x18] sm:$0xf]
        %v544 = vld [vmem:[%s329 + $0x1c] sm:$0xf]
        %v545 = vld [vmem:[%s329 + $0x20] sm:$0xf]
        %v546 = vld [vmem:[%s329 + $0x24] sm:$0xf]
        %v547 = vld [vmem:[%s329 + $0x28] sm:$0xf]
        %v548 = vld [vmem:[%s329 + $0x2c] sm:$0xf]
        %v549 = vld [vmem:[%s329 + $0x30] sm:$0xf]
        %v550 = vld [vmem:[%s329 + $0x34] sm:$0xf]
        %v551 = vld [vmem:[%s329 + $0x38] sm:$0xf]
        %v552 = vld [vmem:[%s329 + $0x3c] sm:$0xf]
        %v569 = vunpack.c.l.b16 %v537
        %v570 = vunpack.c.l.b16 %v538
        %v571 = vunpack.c.l.b16 %v539
        %v572 = vunpack.c.l.b16 %v540
        %v573 = vunpack.c.l.b16 %v541
        %v574 = vunpack.c.l.b16 %v542
        %v575 = vunpack.c.l.b16 %v543
        %v576 = vunpack.c.l.b16 %v544
        %v577 = vunpack.c.l.b16 %v545
        %v578 = vunpack.c.l.b16 %v546
        %v579 = vunpack.c.l.b16 %v547
        %v580 = vunpack.c.l.b16 %v548
        %v581 = vunpack.c.l.b16 %v549
        %v582 = vunpack.c.l.b16 %v550
        %v583 = vunpack.c.l.b16 %v551
        %v584 = vunpack.c.l.b16 %v552
        %v585 = vpack.c.b16 %v570, %v569
        %v586 = vpack.c.b16 %v572, %v571
        %v587 = vpack.c.b16 %v574, %v573
        %v588 = vpack.c.b16 %v576, %v575
        %v589 = vpack.c.b16 %v578, %v577
        %v590 = vpack.c.b16 %v580, %v579
        %v591 = vpack.c.b16 %v582, %v581
        %v592 = vpack.c.b16 %v584, %v583
        %601 = vmatprep.subr.bf16.mxu0 0
        %602 = vmatpush1.bf16.msra.mxu0 %v585
        %603 = vmatprep.subr.bf16.mxu0 0
        %604 = vmatpush1.bf16.msra.mxu0 %v586
        %605 = vmatprep.subr.bf16.mxu0 0
        %606 = vmatpush1.bf16.msra.mxu0 %v587
        %607 = vmatprep.subr.bf16.mxu0 0
        %608 = vmatpush1.bf16.msra.mxu0 %v588
        %609 = vmatprep.subr.bf16.mxu0 0
        %610 = vmatpush1.bf16.msra.mxu0 %v589
        %611 = vmatprep.subr.bf16.mxu0 0
        %612 = vmatpush1.bf16.msra.mxu0 %v590
        %613 = vmatprep.subr.bf16.mxu0 0
        %614 = vmatpush1.bf16.msra.mxu0 %v591
        %615 = vmatprep.subr.bf16.mxu0 0
        %616 = vmatpush1.bf16.msra.mxu0 %v592
        %617 = vmatprep.subr.bf16.mxu0 0
        %618 = vmatpush1.bf16.msra.mxu0 0
        %619 = vmatprep.subr.bf16.mxu0 0
        %620 = vmatpush1.bf16.msra.mxu0 0
        %621 = vmatprep.subr.bf16.mxu0 0
        %622 = vmatpush1.bf16.msra.mxu0 0
        %623 = vmatprep.subr.bf16.mxu0 0
        %624 = vmatpush1.bf16.msra.mxu0 0
        %625 = vmatprep.subr.bf16.mxu0 0
        %626 = vmatpush1.bf16.msra.mxu0 0
        %627 = vmatprep.subr.bf16.mxu0 0
        %628 = vmatpush1.bf16.msra.mxu0 0
        %629 = vmatprep.subr.bf16.mxu0 0
        %630 = vmatpush1.bf16.msra.mxu0 0
        %631 = vmatprep.subr.bf16.mxu0 0
        %632 = vmatpush1.bf16.msra.mxu0 0
        %633 = vmatprep.mubr.bf16.mxu0 0
        %634 = vmatmul.mubr.bf16.gmra.mrb[0].mxu0 %v536
        %v635 = vpop.f32.mrb[0].mxu0
        %v636 = vadd.f32 0.0, %v635
        %v637 = vpop.f32.mrb[0].mxu0
        %v638 = vpop.f32.mrb[0].mxu0
        %v639 = vpop.f32.mrb[0].mxu0
        %640 = vdwg.mxu0
        %v641 = vadd.f32 %v535, %v636
        %642 = vst [vmem:[#allocation3] sm:$0xff] %v641
        %p643 = scmp.eq.s32.totalorder %s32, 1
        // Predicated region
        $region61: #{mlp_forward.1} parent=47 // pred_check
          %p644 = pneg %p643
        $region62: #{mlp_forward.1} parent=47 // pred_check_branch
          %646 = sbr.rel (%p644) target = $region64
        $region63: #{mlp_forward.1} parent=47 // pred_region
          %v647 = vld [vmem:[#allocation3] sm:$0xff]
          %v648 = vld [vmem:[%s6] sm:$0x1]
          %v650 = vlaneseq
          %v651 = vshrl.u32 %v650, 7
          %v652 = vsub.s32 0, %v651
          %v653 = vrot.slane %v648, %v652
          %v655 = vadd.f32 %v647, %v653
          %656 = vst [vmem:[%s371] sm:$0xff] %v655
        $region64: #{mlp_forward.1} parent=47 // pred_fallthru
          _
        %s657 = sand.u32 %s214, 1
        %s658 = scalar_lea.sflag [#allocation6], %s657
        %s659 = sand.u32 %s214, 1
        %s660 = smul.addr %s659, 8
        %s661 = scalar_lea.vmem [#allocation9], %s660
        // Predicated region
        $region65: #{mlp_forward.1} parent=47 // pred_check
          %p662 = pneg %p224
        $region66: #{mlp_forward.1} parent=47 // pred_check_branch
          %664 = sbr.rel (%p662) target = $region68
        $region67: #{mlp_forward.1} parent=47 // pred_region
          %s666 = ssub.s32 128, 128
          %667 = vsyncadd %s658, %s666
          %s668 = smul.addr %s31, 128
          %s669 = scalar_lea.hbm %s7, %s668
          %s671 = sshll.u32 %s661, 4
          %s672 = int_to_ptr.vmem [resolvable:$true] %s671
          %674 = dma.vmem_to_hbm [thread:$0]  %s672, 128, %s669, %s658
        $region68: #{mlp_forward.1} parent=47 // pred_fallthru
          _
      $region48: #{mlp_forward.1} parent=5 // pred_fallthru
        _
      %p675 = scmp.le.s32.totalorder 2, %s22
      // Predicated region
      $region69: #{mlp_forward.1} parent=5 // pred_check
        %p676 = pneg %p675
      $region70: #{mlp_forward.1} parent=5 // pred_check_branch
        %678 = sbr.rel (%p676) target = $region72
      $region71: #{mlp_forward.1} parent=5 // pred_region
        %s679 = ssub.s32 %s22, 2
        // Predicated region
        $region73: #{mlp_forward.1} parent=71 // pred_check
          %p680 = pneg %p230
        $region74: #{mlp_forward.1} parent=71 // pred_check_branch
          %682 = sbr.rel (%p680) target = $region76
        $region75: #{mlp_forward.1} parent=71 // pred_region
          %s683 = sand.u32 %s215, 1
          %s684 = scalar_lea.sflag [#allocation6], %s683
          %s685 = sand.u32 %s215, 1
          %s686 = smul.addr %s685, 8
          %s687 = scalar_lea.vmem [#allocation9], %s686
          %688 = dma.done %s684, 128
        $region76: #{mlp_forward.1} parent=71 // pred_fallthru
          _
      $region72: #{mlp_forward.1} parent=5 // pred_fallthru
        _
    $region6: #{mlp_forward.1} parent=1 // loop_footer
      %s26 = sadd.s32 1, %s22
    $region7: #{mlp_forward.1} parent=1 // loop_footer_branch
      %21 = sbr.rel target = $region3
    $region8: #{mlp_forward.1} parent=1 // loop_exit
      _
    %689 = vsyncpa [#allocation5], 1
    %s690 = scalar_lea.sflag [#allocation5], 1
    %691 = vsyncpa %s690, 1
    %692 = vsyncpa [#allocation8], 1
    %s693 = scalar_lea.sflag [#allocation8], 1
    %694 = vsyncpa %s693, 1
    %695 = vsyncpa [#allocation6], 1
    %s696 = scalar_lea.sflag [#allocation6], 1
    %697 = vsyncpa %s696, 1

</llo_original>
